<compile_context>
chip_gen: v6e
topology: v6e:2x2x1
jax: 0.10.0
libtpu: 0.0.40
codegen_flags: <defaults>
</compile_context>

<pallas_src>
import math

import jax
import jax.numpy as jnp
from jax.experimental import pallas as pl
from jax.experimental.pallas import tpu as pltpu


def _round_up(x, m):
    return (x + m - 1) // m * m


def _gelu_tanh(x):
    # matches torch.nn.functional.gelu(x, approximate='tanh')
    c = math.sqrt(2.0 / math.pi)
    return 0.5 * x * (1.0 + jnp.tanh(c * (x + 0.044715 * x * x * x)))


def mlp_block_kernel(x_ref, wup_ref, bup_ref, wd_ref, bd_ref, o_ref, acc_ref):
    """One (row-tile, E-chunk) step of the fused MLP block."""
    k = pl.program_id(1)
    te = wd_ref.shape[0]                              # static E-chunk width

    @pl.when(k == 0)
    def _():
        acc_ref[...] = jnp.zeros_like(acc_ref)

    # Single fused up-projection: (tm, D) @ (D, 2*te) -> (tm, 2*te), f32 acc.
    h = jnp.dot(x_ref[...], wup_ref[...],
                preferred_element_type=jnp.float32) + bup_ref[...]
    h0 = h[:, :te]                                    # gate pre-activation
    h1 = h[:, te:]                                    # value path
    act = _gelu_tanh(h0) * h1                         # f32, EUP tanh

    # Partial down-projection for this E-chunk, accumulated in f32 scratch.
    acc_ref[...] += jnp.dot(act.astype(wd_ref.dtype), wd_ref[...],
                            preferred_element_type=jnp.float32)

    @pl.when(k == pl.num_programs(1) - 1)
    def _():
        o_ref[...] = (acc_ref[...] + bd_ref[...]).astype(o_ref.dtype)


def mlp_block_pallas(x, w_up, b_up, w_down_t, b_down, *, tm=256, te=512,
                     compute_dtype=jnp.bfloat16):
    """x: (B, T, D); w_up: (2, D, E); b_up: (2, E);
    w_down_t: (E, D)  (already-transposed nn.Linear weight); b_down: (D,)."""
    B, T, D = x.shape
    E = w_up.shape[-1]
    M = B * T

    # Lane-dense padding: last dims presented to the kernel are multiples of 128.
    D_pad = _round_up(max(D, 128), 128)
    E_pad = _round_up(max(E, 128), 128)
    te_eff = min(te, E_pad)                  # E-chunk width (multiple of 128)
    E_pad = _round_up(E_pad, te_eff)
    n_ek = E_pad // te_eff

    # Row tile: large for MXU occupancy but never larger than the padded row
    # count (small-demo case).  For large M, M // tm >= 2 keeps both v7x
    # TensorCores busy via the "parallel" M axis.
    tm_eff = min(tm, _round_up(M, 8))
    M_pad = _round_up(M, tm_eff)
    n_m = M_pad // tm_eff

    f32 = jnp.float32
    xf = jnp.pad(x.reshape(M, D), ((0, M_pad - M), (0, D_pad - D)))
    xf = xf.astype(compute_dtype)

    # Fused up weight (D_pad, 2*E_pad): E-chunk k = [w0_chunk_k | w1_chunk_k].
    wup = jnp.pad(w_up, ((0, 0), (0, D_pad - D), (0, E_pad - E)))
    wup = wup.reshape(2, D_pad, n_ek, te_eff).transpose(1, 2, 0, 3)
    wup = wup.reshape(D_pad, 2 * E_pad).astype(compute_dtype)

    bup = jnp.pad(b_up, ((0, 0), (0, E_pad - E)))
    bup = bup.reshape(2, n_ek, te_eff).transpose(1, 0, 2)
    bup = bup.reshape(1, 2 * E_pad).astype(f32)

    wd = jnp.pad(w_down_t, ((0, E_pad - E), (0, D_pad - D))).astype(compute_dtype)
    bd = jnp.pad(b_down, (0, D_pad - D)).reshape(1, D_pad).astype(f32)

    out_flat = pl.pallas_call(
        mlp_block_kernel,
        out_shape=jax.ShapeDtypeStruct((M_pad, D_pad), x.dtype),
        grid_spec=pltpu.PrefetchScalarGridSpec(
            num_scalar_prefetch=0,
            grid=(n_m, n_ek),
            in_specs=[
                pl.BlockSpec((tm_eff, D_pad), lambda i, k: (i, 0)),      # x row tile
                pl.BlockSpec((D_pad, 2 * te_eff), lambda i, k: (0, k)),  # fused W_up chunk
                pl.BlockSpec((1, 2 * te_eff), lambda i, k: (0, k)),      # fused b_up chunk
                pl.BlockSpec((te_eff, D_pad), lambda i, k: (k, 0)),      # W_down.T chunk
                pl.BlockSpec((1, D_pad), lambda i, k: (0, 0)),           # b_down
            ],
            out_specs=pl.BlockSpec((tm_eff, D_pad), lambda i, k: (i, 0)),
            scratch_shapes=[pltpu.VMEM((tm_eff, D_pad), jnp.float32)],
        ),
        compiler_params=pltpu.CompilerParams(
            dimension_semantics=("parallel", "arbitrary"),
            vmem_limit_bytes=32 * 1024 * 1024,
        ),
    )(xf, wup, bup, wd, bd)

    return out_flat[:M, :D].reshape(B, T, D)


def mlp_block_reference(x, w_up, b_up, w_down_t, b_down, *,
                        matmul_dtype=jnp.float32):
    """Pure-JAX reference mirroring the PyTorch forward.  matmul_dtype lets us
    mirror the kernel's bf16-operand / f32-accumulate numerics exactly."""
    h = jnp.einsum("btd,cdD->cbtD",
                   x.astype(matmul_dtype), w_up.astype(matmul_dtype),
                   preferred_element_type=jnp.float32)
    h = h + b_up[:, None, None, :].astype(jnp.float32)
    act = _gelu_tanh(h[0]) * h[1]
    out = jnp.dot(act.astype(matmul_dtype), w_down_t.astype(matmul_dtype),
                  preferred_element_type=jnp.float32) + b_down
    return out.astype(x.dtype)


if __name__ == "__main__":
    # Module hyper-params (small demo shapes; wrapper pads D/E to 128 lanes)
    width = 32           # D
    expanded_width = 64  # E
    batch, seq = 2, 8

    key = jax.random.PRNGKey(0)
    k_x, k_wu, k_wd = jax.random.split(key, 3)

    x = jax.random.normal(k_x, (batch, seq, width), dtype=jnp.float32)

    # Deterministic parameter init matching MLPBlock.reset_parameters:
    #   ffw_up.w  ~ N(0, 1/width),             ffw_up.b  = 0
    #   ffw_down.weight ~ N(0, 1/expanded_width), bias = 0
    std_up = math.sqrt(1.0 / width)
    w_up = std_up * jax.random.normal(
        k_wu, (2, width, expanded_width), dtype=jnp.float32)
    b_up = jnp.zeros((2, expanded_width), dtype=jnp.float32)

    std_down = math.sqrt(1.0 / expanded_width)
    w_down = std_down * jax.random.normal(
        k_wd, (width, expanded_width), dtype=jnp.float32)  # nn.Linear (out, in)
    w_down_t = w_down.T                                    # (E, D) for act @ W.T
    b_down = jnp.zeros((width,), dtype=jnp.float32)

    out = mlp_block_pallas(x, w_up, b_up, w_down_t, b_down)
    out = jax.block_until_ready(out)
    assert out.shape == (batch, seq, width)

    # Tight check against a reference with the same bf16-matmul numerics.
    ref_bf16 = mlp_block_reference(x, w_up, b_up, w_down_t, b_down,
                                   matmul_dtype=jnp.bfloat16)
    assert jnp.allclose(out, ref_bf16, atol=5e-3, rtol=5e-3), \
        "mismatch vs bf16-matmul reference"

    # Loose check against the full-f32 PyTorch-equivalent reference
    # (bf16 matmul operands introduce ~1e-2 absolute error at these scales).
    ref_f32 = mlp_block_reference(x, w_up, b_up, w_down_t, b_down,
                                  matmul_dtype=jnp.float32)
    assert jnp.allclose(out, ref_f32, atol=5e-2, rtol=5e-2), \
        "mismatch vs f32 reference"

    print("KERNEL_OK")
</pallas_src>

<mosaic_0001>
module attributes {stable_mosaic.version = 11 : i64} {
  func.func @mlp_block_kernel(%arg0: i32, %arg1: i32, %arg2: memref<16x128xbf16, #tpu.memory_space<vmem>>, %arg3: memref<128x256xbf16, #tpu.memory_space<vmem>>, %arg4: memref<1x256xf32, #tpu.memory_space<vmem>>, %arg5: memref<128x128xbf16, #tpu.memory_space<vmem>>, %arg6: memref<1x128xf32, #tpu.memory_space<vmem>>, %arg7: memref<16x128xf32, #tpu.memory_space<vmem>>, %arg8: memref<16x128xf32, #tpu.memory_space<vmem>>) attributes {dimension_semantics = [#tpu.dimension_semantics<parallel>, #tpu.dimension_semantics<arbitrary>], iteration_bounds = array<i64: 1, 1>, scalar_prefetch = 0 : i64, scratch_operands = 1 : i64, tpu.core_type = #tpu.core_type<tc>, window_params = [{transform_indices = @transform_0, window_bounds = array<i64: 16, 128>}, {transform_indices = @transform_1, window_bounds = array<i64: 128, 256>}, {transform_indices = @transform_2, window_bounds = array<i64: 1, 256>}, {transform_indices = @transform_3, window_bounds = array<i64: 128, 128>}, {pipeline_mode = #tpu.pipeline_mode<synchronous>, transform_indices = @transform_4, window_bounds = array<i64: 1, 128>}, {transform_indices = @transform_5, window_bounds = array<i64: 16, 128>}]} {
    %c0_i32 = arith.constant 0 : i32
    %0 = arith.cmpi eq, %arg1, %c0_i32 : i32
    %1 = arith.extui %0 : i1 to i32
    %c0_i32_0 = arith.constant 0 : i32
    %2 = arith.cmpi ne, %1, %c0_i32_0 : i32
    scf.if %2 {
      %cst_19 = arith.constant 0.000000e+00 : f32
      %34 = vector.broadcast %cst_19 : f32 to vector<16x128xf32>
      %c0_20 = arith.constant 0 : index
      %c0_21 = arith.constant 0 : index
      %35 = vector.load %arg8[%c0_20, %c0_21] : memref<16x128xf32, #tpu.memory_space<vmem>>, vector<16x128xf32>
      tpu.vector_store %arg8[%c0_20, %c0_21], %34 {strides = array<i32>} : memref<16x128xf32, #tpu.memory_space<vmem>>, vector<16x128xf32>,
    } else {
    }
    %c0 = arith.constant 0 : index
    %c0_1 = arith.constant 0 : index
    %3 = vector.load %arg2[%c0, %c0_1] : memref<16x128xbf16, #tpu.memory_space<vmem>>, vector<16x128xbf16>
    %c0_2 = arith.constant 0 : index
    %c0_3 = arith.constant 0 : index
    %4 = vector.load %arg3[%c0_2, %c0_3] : memref<128x256xbf16, #tpu.memory_space<vmem>>, vector<128x256xbf16>
    %cst = arith.constant dense<0.000000e+00> : vector<16x256xf32>
    %5 = tpu.matmul %3, %4, %cst {dimension_numbers = #tpu.dot_dimension_numbers<[1], [0], [0], [1], [0, 0, 1, 1], [], []>} : vector<16x128xbf16>, vector<128x256xbf16>, vector<16x256xf32> -> vector<16x256xf32>
    %c0_4 = arith.constant 0 : index
    %c0_5 = arith.constant 0 : index
    %6 = vector.load %arg4[%c0_4, %c0_5] : memref<1x256xf32, #tpu.memory_space<vmem>>, vector<1x256xf32>
    %7 = vector.broadcast %6 : vector<1x256xf32> to vector<16x256xf32>
    %8 = arith.addf %5, %7 : vector<16x256xf32>
    %9 = vector.extract_strided_slice %8 {offsets = [0, 0], sizes = [16, 128], strides = [1, 1]} : vector<16x256xf32> to vector<16x128xf32>
    %10 = vector.extract_strided_slice %8 {offsets = [0, 128], sizes = [16, 128], strides = [1, 1]} : vector<16x256xf32> to vector<16x128xf32>
    %cst_6 = arith.constant 5.000000e-01 : f32
    %11 = vector.broadcast %cst_6 : f32 to vector<16x128xf32>
    %12 = arith.mulf %11, %9 : vector<16x128xf32>
    %cst_7 = arith.constant 4.471500e-02 : f32
    %13 = vector.broadcast %cst_7 : f32 to vector<16x128xf32>
    %14 = arith.mulf %13, %9 : vector<16x128xf32>
    %15 = arith.mulf %14, %9 : vector<16x128xf32>
    %16 = arith.mulf %15, %9 : vector<16x128xf32>
    %17 = arith.addf %9, %16 : vector<16x128xf32>
    %cst_8 = arith.constant 0.797884583 : f32
    %18 = vector.broadcast %cst_8 : f32 to vector<16x128xf32>
    %19 = arith.mulf %18, %17 : vector<16x128xf32>
    %20 = math.tanh %19 : vector<16x128xf32>
    %cst_9 = arith.constant 1.000000e+00 : f32
    %21 = vector.broadcast %cst_9 : f32 to vector<16x128xf32>
    %22 = arith.addf %21, %20 : vector<16x128xf32>
    %23 = arith.mulf %12, %22 : vector<16x128xf32>
    %24 = arith.mulf %23, %10 : vector<16x128xf32>
    %c0_10 = arith.constant 0 : index
    %c0_11 = arith.constant 0 : index
    %25 = vector.load %arg8[%c0_10, %c0_11] : memref<16x128xf32, #tpu.memory_space<vmem>>, vector<16x128xf32>
    %26 = arith.truncf %24 : vector<16x128xf32> to vector<16x128xbf16>
    %c0_12 = arith.constant 0 : index
    %c0_13 = arith.constant 0 : index
    %27 = vector.load %arg5[%c0_12, %c0_13] : memref<128x128xbf16, #tpu.memory_space<vmem>>, vector<128x128xbf16>
    %cst_14 = arith.constant dense<0.000000e+00> : vector<16x128xf32>
    %28 = tpu.matmul %26, %27, %cst_14 {dimension_numbers = #tpu.dot_dimension_numbers<[1], [0], [0], [1], [0, 0, 1, 1], [], []>} : vector<16x128xbf16>, vector<128x128xbf16>, vector<16x128xf32> -> vector<16x128xf32>
    %29 = arith.addf %25, %28 : vector<16x128xf32>
    %c0_15 = arith.constant 0 : index
    %c0_16 = arith.constant 0 : index
    %30 = vector.load %arg8[%c0_15, %c0_16] : memref<16x128xf32, #tpu.memory_space<vmem>>, vector<16x128xf32>
    tpu.vector_store %arg8[%c0_15, %c0_16], %29 {strides = array<i32>} : memref<16x128xf32, #tpu.memory_space<vmem>>, vector<16x128xf32>,
    %c0_i32_17 = arith.constant 0 : i32
    %31 = arith.cmpi eq, %arg1, %c0_i32_17 : i32
    %32 = arith.extui %31 : i1 to i32
    %c0_i32_18 = arith.constant 0 : i32
    %33 = arith.cmpi ne, %32, %c0_i32_18 : i32
    scf.if %33 {
      %c0_19 = arith.constant 0 : index
      %c0_20 = arith.constant 0 : index
      %34 = vector.load %arg8[%c0_19, %c0_20] : memref<16x128xf32, #tpu.memory_space<vmem>>, vector<16x128xf32>
      %c0_21 = arith.constant 0 : index
      %c0_22 = arith.constant 0 : index
      %35 = vector.load %arg6[%c0_21, %c0_22] : memref<1x128xf32, #tpu.memory_space<vmem>>, vector<1x128xf32>
      %36 = vector.broadcast %35 : vector<1x128xf32> to vector<16x128xf32>
      %37 = arith.addf %34, %36 : vector<16x128xf32>
      %c0_23 = arith.constant 0 : index
      %c0_24 = arith.constant 0 : index
      %38 = vector.load %arg7[%c0_23, %c0_24] : memref<16x128xf32, #tpu.memory_space<vmem>>, vector<16x128xf32>
      tpu.vector_store %arg7[%c0_23, %c0_24], %37 {strides = array<i32>} : memref<16x128xf32, #tpu.memory_space<vmem>>, vector<16x128xf32>,
    } else {
    }
    return
  }
  func.func @transform_0(%arg0: i32, %arg1: i32) -> (i32, i32) {
    %c0_i32 = arith.constant 0 : i32
    %c0_i32_0 = arith.constant 0 : i32
    return %arg0, %c0_i32 : i32, i32
  }
  func.func @transform_1(%arg0: i32, %arg1: i32) -> (i32, i32) {
    %c0_i32 = arith.constant 0 : i32
    %c0_i32_0 = arith.constant 0 : i32
    return %c0_i32, %arg1 : i32, i32
  }
  func.func @transform_2(%arg0: i32, %arg1: i32) -> (i32, i32) {
    %c0_i32 = arith.constant 0 : i32
    %c0_i32_0 = arith.constant 0 : i32
    return %c0_i32, %arg1 : i32, i32
  }
  func.func @transform_3(%arg0: i32, %arg1: i32) -> (i32, i32) {
    %c0_i32 = arith.constant 0 : i32
    %c0_i32_0 = arith.constant 0 : i32
    return %arg1, %c0_i32 : i32, i32
  }
  func.func @transform_4(%arg0: i32, %arg1: i32) -> (i32, i32) {
    %c0_i32 = arith.constant 0 : i32
    %c0_i32_0 = arith.constant 0 : i32
    %c0_i32_1 = arith.constant 0 : i32
    return %c0_i32, %c0_i32_0 : i32, i32
  }
  func.func @transform_5(%arg0: i32, %arg1: i32) -> (i32, i32) {
    %c0_i32 = arith.constant 0 : i32
    %c0_i32_0 = arith.constant 0 : i32
    return %arg0, %c0_i32 : i32, i32
  }
}

</mosaic_0001>

<llo_original>
// kernel: tpu_custom_call.1
$region0: #{tpu_custom_call.1}
  #allocation0 [shape = 'u32[]', space=smem, size = 0x4, offset = 0x4, fixed_abs, tag = 'smem constant byte address 0x4 - core index']
  #allocation1 [shape = 'u32[144,128]{1,0:T(1,128)}', space=vmem, size = 0x12000, scoped, tag = 'internal scratch']
  #allocation2 [shape = 'f32[16,128]{1,0:T(8,128)}', space=vmem, size = 0x2000, scoped, tag = 'scratch operand']
  %s0 = inlined_call_operand.hbm [shape: bf16[16,128], index: 0, kind: input, shape index: {}]
  %s1 = inlined_call_operand.hbm [shape: bf16[128,256], index: 1, kind: input, shape index: {}]
  %s2 = inlined_call_operand.vmem [shape: f32[1,256], index: 2, kind: input, shape index: {}]
  %s3 = inlined_call_operand.hbm [shape: bf16[128,128], index: 3, kind: input, shape index: {}]
  %s4 = inlined_call_operand.vmem [shape: f32[1,128], index: 4, kind: input, shape index: {}]
  %s5 = inlined_call_operand.hbm [shape: f32[16,128], index: 5, kind: output, shape index: {}]
  %s6 = sld [smem:[#allocation0]]
  $region50: #{tpu_custom_call.1} parent=0
    _
  %s8 = ssub.s32 1, %s6
  %s9 = scalar_select 0, %s8, %s6
  $region1: #{tpu_custom_call.1} parent=0
    #allocation3 [shape = 'u8[4096]{0}', space=vmem, size = 0x1000, scoped, tag = 'input window, operand 0, single buffered']
    #allocation4 [shape = 's32[1]{0}', space=sflag, size = 0x4, scoped, tag = 'scoped memory for tpu_custom_call.1']
    #allocation5 [shape = 's32[1]{0}', space=sflag, size = 0x4, scoped, tag = 'scoped memory for tpu_custom_call.1']
    #allocation6 [shape = 'u8[65536]{0}', space=vmem, size = 0x10000, scoped, tag = 'input window, operand 1, single buffered']
    #allocation7 [shape = 's32[1]{0}', space=sflag, size = 0x4, scoped, tag = 'scoped memory for tpu_custom_call.1']
    #allocation8 [shape = 'u8[32768]{0}', space=vmem, size = 0x8000, scoped, tag = 'input window, operand 3, single buffered']
    #allocation9 [shape = 'u8[8192]{0}', space=vmem, size = 0x2000, scoped, tag = 'output window, operand 0, single buffered']
    %10 = vsyncpa [#allocation4], 0
    %11 = vsyncpa [#allocation7], 0
    %12 = vsyncpa [#allocation5], 0
    // Predicated region
    $region2: #{tpu_custom_call.1} parent=1 // pred_check
      _
    $region3: #{tpu_custom_call.1} parent=1 // pred_check_branch
      %14 = sbr.rel (0) target = $region5
    $region4: #{tpu_custom_call.1} parent=1 // pred_region
      %s16 = ssub.s32 128, 128
      %17 = vsyncadd [#allocation4], %s16
      %s18 = sshll.u32 [#allocation3], 4
      %s19 = int_to_ptr.vmem [resolvable:$true] %s18
      %24 = dma.hbm_to_vmem [thread:$0]  %s0, 128, %s19, [#allocation4], 64, 64, 4
    $region5: #{tpu_custom_call.1} parent=1 // pred_fallthru
      _
    // Predicated region
    $region6: #{tpu_custom_call.1} parent=1 // pred_check
      _
    $region7: #{tpu_custom_call.1} parent=1 // pred_check_branch
      %26 = sbr.rel (0) target = $region9
    $region8: #{tpu_custom_call.1} parent=1 // pred_region
      %s28 = ssub.s32 2048, 2048
      %29 = vsyncadd [#allocation7], %s28
      %s30 = sshll.u32 [#allocation6], 4
      %s31 = int_to_ptr.vmem [resolvable:$true] %s30
      %36 = dma.hbm_to_vmem [thread:$0]  %s1, 2048, %s31, [#allocation7], 128, 128, 8
    $region9: #{tpu_custom_call.1} parent=1 // pred_fallthru
      _
    // Predicated region
    $region10: #{tpu_custom_call.1} parent=1 // pred_check
      _
    $region11: #{tpu_custom_call.1} parent=1 // pred_check_branch
      %38 = sbr.rel (0) target = $region13
    $region12: #{tpu_custom_call.1} parent=1 // pred_region
      _
    $region13: #{tpu_custom_call.1} parent=1 // pred_fallthru
      _
    // Predicated region
    $region14: #{tpu_custom_call.1} parent=1 // pred_check
      _
    $region15: #{tpu_custom_call.1} parent=1 // pred_check_branch
      %40 = sbr.rel (0) target = $region17
    $region16: #{tpu_custom_call.1} parent=1 // pred_region
      %s42 = ssub.s32 1024, 1024
      %43 = vsyncadd [#allocation7], %s42
      %s44 = sshll.u32 [#allocation8], 4
      %s45 = int_to_ptr.vmem [resolvable:$true] %s44
      %50 = dma.hbm_to_vmem [thread:$0]  %s3, 1024, %s45, [#allocation7], 64, 64, 4
    $region17: #{tpu_custom_call.1} parent=1 // pred_fallthru
      _
    // Predicated region
    $region18: #{tpu_custom_call.1} parent=1 // pred_check
      _
    $region19: #{tpu_custom_call.1} parent=1 // pred_check_branch
      %52 = sbr.rel (0) target = $region21
    $region20: #{tpu_custom_call.1} parent=1 // pred_region
      _
    $region21: #{tpu_custom_call.1} parent=1 // pred_fallthru
      _
    // Predicated region
    $region22: #{tpu_custom_call.1} parent=1 // pred_check
      _
    $region23: #{tpu_custom_call.1} parent=1 // pred_check_branch
      %54 = sbr.rel (0) target = $region25
    $region24: #{tpu_custom_call.1} parent=1 // pred_region
      %55 = dma.done [#allocation4], 128
    $region25: #{tpu_custom_call.1} parent=1 // pred_fallthru
      _
    // Predicated region
    $region26: #{tpu_custom_call.1} parent=1 // pred_check
      _
    $region27: #{tpu_custom_call.1} parent=1 // pred_check_branch
      %57 = sbr.rel (0) target = $region29
    $region28: #{tpu_custom_call.1} parent=1 // pred_region
      %58 = dma.done [#allocation7], 2048
    $region29: #{tpu_custom_call.1} parent=1 // pred_fallthru
      _
    // Predicated region
    $region30: #{tpu_custom_call.1} parent=1 // pred_check
      _
    $region31: #{tpu_custom_call.1} parent=1 // pred_check_branch
      %60 = sbr.rel (0) target = $region33
    $region32: #{tpu_custom_call.1} parent=1 // pred_region
      %61 = dma.done [#allocation7], 1024
    $region33: #{tpu_custom_call.1} parent=1 // pred_fallthru
      _
    %p63 = scmp.eq.s32.totalorder 0, 0
    // Predicated region
    $region34: #{tpu_custom_call.1} parent=1 // pred_check
      %p64 = pneg %p63
    $region35: #{tpu_custom_call.1} parent=1 // pred_check_branch
      %66 = sbr.rel (%p64) target = $region37
    $region36: #{tpu_custom_call.1} parent=1 // pred_region
      %67 = vst [vmem:[#allocation2] sm:$0xff] 0.0
      %68 = vst [vmem:[#allocation2 + $0x8] sm:$0xff] 0.0
    $region37: #{tpu_custom_call.1} parent=1 // pred_fallthru
      _
    %v69 = vld [vmem:[#allocation3] sm:$0xf]
    %v70 = vld [vmem:[#allocation3 + $0x4] sm:$0xf]
    %v71 = vld [vmem:[#allocation6] sm:$0xff]
    %v72 = vld [vmem:[#allocation6 + $0x8] sm:$0xff]
    %v73 = vld [vmem:[#allocation6 + $0x10] sm:$0xff]
    %v74 = vld [vmem:[#allocation6 + $0x18] sm:$0xff]
    %v75 = vld [vmem:[#allocation6 + $0x20] sm:$0xff]
    %v76 = vld [vmem:[#allocation6 + $0x28] sm:$0xff]
    %v77 = vld [vmem:[#allocation6 + $0x30] sm:$0xff]
    %v78 = vld [vmem:[#allocation6 + $0x38] sm:$0xff]
    %v79 = vld [vmem:[#allocation6 + $0x40] sm:$0xff]
    %v80 = vld [vmem:[#allocation6 + $0x48] sm:$0xff]
    %v81 = vld [vmem:[#allocation6 + $0x50] sm:$0xff]
    %v82 = vld [vmem:[#allocation6 + $0x58] sm:$0xff]
    %v83 = vld [vmem:[#allocation6 + $0x60] sm:$0xff]
    %v84 = vld [vmem:[#allocation6 + $0x68] sm:$0xff]
    %v85 = vld [vmem:[#allocation6 + $0x70] sm:$0xff]
    %v86 = vld [vmem:[#allocation6 + $0x78] sm:$0xff]
    %v87 = vld [vmem:[%s2] sm:$0x3]
    %v89 = vlaneseq
    %v90 = vshrl.u32 %v89, 7
    %v91 = vsub.s32 0, %v90
    %v92 = vrot.slane %v87, %v91
    %v93 = vlaneseq
    %v94 = vshrl.u32 %v93, 7
    %v95 = vsub.s32 1, %v94
    %v96 = vrot.slane %v87, %v95
    %v101 = vunpack.c.l.b16 %v69
    %v102 = vunpack.c.l.b16 %v70
    %v103 = vpack.c.b16 %v102, %v101
    %v121 = vunpack.c.l.b16 %v71
    %v122 = vunpack.c.h.b16 %v71
    %v123 = vunpack.c.l.b16 %v72
    %v124 = vunpack.c.h.b16 %v72
    %v125 = vunpack.c.l.b16 %v73
    %v126 = vunpack.c.h.b16 %v73
    %v127 = vunpack.c.l.b16 %v74
    %v128 = vunpack.c.h.b16 %v74
    %v129 = vunpack.c.l.b16 %v75
    %v130 = vunpack.c.h.b16 %v75
    %v131 = vunpack.c.l.b16 %v76
    %v132 = vunpack.c.h.b16 %v76
    %v133 = vunpack.c.l.b16 %v77
    %v134 = vunpack.c.h.b16 %v77
    %v135 = vunpack.c.l.b16 %v78
    %v136 = vunpack.c.h.b16 %v78
    %v137 = vunpack.c.l.b16 %v79
    %v138 = vunpack.c.h.b16 %v79
    %v139 = vunpack.c.l.b16 %v80
    %v140 = vunpack.c.h.b16 %v80
    %v141 = vunpack.c.l.b16 %v81
    %v142 = vunpack.c.h.b16 %v81
    %v143 = vunpack.c.l.b16 %v82
    %v144 = vunpack.c.h.b16 %v82
    %v145 = vunpack.c.l.b16 %v83
    %v146 = vunpack.c.h.b16 %v83
    %v147 = vunpack.c.l.b16 %v84
    %v148 = vunpack.c.h.b16 %v84
    %v149 = vunpack.c.l.b16 %v85
    %v150 = vunpack.c.h.b16 %v85
    %v151 = vunpack.c.l.b16 %v86
    %v152 = vunpack.c.h.b16 %v86
    %v153 = vpack.c.b16 %v123, %v121
    %v154 = vpack.c.b16 %v124, %v122
    %v155 = vpack.c.b16 %v127, %v125
    %v156 = vpack.c.b16 %v128, %v126
    %v157 = vpack.c.b16 %v131, %v129
    %v158 = vpack.c.b16 %v132, %v130
    %v159 = vpack.c.b16 %v135, %v133
    %v160 = vpack.c.b16 %v136, %v134
    %v161 = vpack.c.b16 %v139, %v137
    %v162 = vpack.c.b16 %v140, %v138
    %v163 = vpack.c.b16 %v143, %v141
    %v164 = vpack.c.b16 %v144, %v142
    %v165 = vpack.c.b16 %v147, %v145
    %v166 = vpack.c.b16 %v148, %v146
    %v167 = vpack.c.b16 %v151, %v149
    %v168 = vpack.c.b16 %v152, %v150
    %185 = vmatprep.subr.bf16.mxu0 %v168
    %186 = vmatpush1.bf16.msra.mxu0 %v167
    %187 = vmatprep.subr.bf16.mxu0 %v166
    %188 = vmatpush1.bf16.msra.mxu0 %v165
    %189 = vmatprep.subr.bf16.mxu0 %v164
    %190 = vmatpush1.bf16.msra.mxu0 %v163
    %191 = vmatprep.subr.bf16.mxu0 %v162
    %192 = vmatpush1.bf16.msra.mxu0 %v161
    %193 = vmatprep.subr.bf16.mxu0 %v160
    %194 = vmatpush1.bf16.msra.mxu0 %v159
    %195 = vmatprep.subr.bf16.mxu0 %v158
    %196 = vmatpush1.bf16.msra.mxu0 %v157
    %197 = vmatprep.subr.bf16.mxu0 %v156
    %198 = vmatpush1.bf16.msra.mxu0 %v155
    %199 = vmatprep.subr.bf16.mxu0 %v154
    %200 = vmatpush1.bf16.msra.mxu0 %v153
    %201 = vmatprep.subr.bf16.mxu0 0
    %202 = vmatpush2.bf16.msra.mxu0 0
    %203 = vmatprep.subr.bf16.mxu0 0
    %204 = vmatpush2.bf16.msra.mxu0 0
    %205 = vmatprep.subr.bf16.mxu0 0
    %206 = vmatpush2.bf16.msra.mxu0 0
    %207 = vmatprep.subr.bf16.mxu0 0
    %208 = vmatpush2.bf16.msra.mxu0 0
    %209 = vmatprep.subr.bf16.mxu0 0
    %210 = vmatpush2.bf16.msra.mxu0 0
    %211 = vmatprep.subr.bf16.mxu0 0
    %212 = vmatpush2.bf16.msra.mxu0 0
    %213 = vmatprep.subr.bf16.mxu0 0
    %214 = vmatpush2.bf16.msra.mxu0 0
    %215 = vmatprep.subr.bf16.mxu0 0
    %216 = vmatpush2.bf16.msra.mxu0 0
    %217 = vmatprep.mubr.bf16.mxu0 0
    %218 = vmatmul.mubr.bf16.gmra.mxu0 %v103
    %v219 = vpop.f32.mrf.mxu0
    %v220 = vadd.f32 %v92, %v219
    %v221 = vpop.f32.mrf.mxu0
    %v222 = vadd.f32 %v96, %v221
    %v223 = vpop.f32.mrf.mxu0
    %v224 = vadd.f32 %v92, %v223
    %v225 = vpop.f32.mrf.mxu0
    %v226 = vadd.f32 %v96, %v225
    %227 = vdwg.mxu0
    %v228 = vmul.f32 %v220, 0.5
    %v229 = vmul.f32 %v224, 0.5
    %v230 = vmul.f32 %v220, 0.044715
    %v231 = vmul.f32 %v224, 0.044715
    %v232 = vmul.f32 %v230, %v220
    %v233 = vmul.f32 %v231, %v224
    %v234 = vmul.f32 %v232, %v220
    %v235 = vmul.f32 %v233, %v224
    %v236 = vadd.f32 %v220, %v234
    %v237 = vadd.f32 %v224, %v235
    %v238 = vmul.f32 %v236, 0.7978846
    %v239 = vmul.f32 %v237, 0.7978846
    %v240 = vtanh.pop %v238
    %v241 = vtanh.pop %v239
    %v242 = vadd.f32 %v240, 1.0
    %v243 = vadd.f32 %v241, 1.0
    %v244 = vmul.f32 %v228, %v242
    %v245 = vmul.f32 %v229, %v243
    %v246 = vmul.f32 %v244, %v222
    %v247 = vmul.f32 %v245, %v226
    %v248 = vld [vmem:[#allocation2] sm:$0xff]
    %v249 = vld [vmem:[#allocation2 + $0x8] sm:$0xff]
    %v250 = vpack.c.bf16 %v247, %v246
    %v251 = vld [vmem:[#allocation8] sm:$0xf]
    %v252 = vld [vmem:[#allocation8 + $0x4] sm:$0xf]
    %v253 = vld [vmem:[#allocation8 + $0x8] sm:$0xf]
    %v254 = vld [vmem:[#allocation8 + $0xc] sm:$0xf]
    %v255 = vld [vmem:[#allocation8 + $0x10] sm:$0xf]
    %v256 = vld [vmem:[#allocation8 + $0x14] sm:$0xf]
    %v257 = vld [vmem:[#allocation8 + $0x18] sm:$0xf]
    %v258 = vld [vmem:[#allocation8 + $0x1c] sm:$0xf]
    %v259 = vld [vmem:[#allocation8 + $0x20] sm:$0xf]
    %v260 = vld [vmem:[#allocation8 + $0x24] sm:$0xf]
    %v261 = vld [vmem:[#allocation8 + $0x28] sm:$0xf]
    %v262 = vld [vmem:[#allocation8 + $0x2c] sm:$0xf]
    %v263 = vld [vmem:[#allocation8 + $0x30] sm:$0xf]
    %v264 = vld [vmem:[#allocation8 + $0x34] sm:$0xf]
    %v265 = vld [vmem:[#allocation8 + $0x38] sm:$0xf]
    %v266 = vld [vmem:[#allocation8 + $0x3c] sm:$0xf]
    %v283 = vunpack.c.l.b16 %v251
    %v284 = vunpack.c.l.b16 %v252
    %v285 = vunpack.c.l.b16 %v253
    %v286 = vunpack.c.l.b16 %v254
    %v287 = vunpack.c.l.b16 %v255
    %v288 = vunpack.c.l.b16 %v256
    %v289 = vunpack.c.l.b16 %v257
    %v290 = vunpack.c.l.b16 %v258
    %v291 = vunpack.c.l.b16 %v259
    %v292 = vunpack.c.l.b16 %v260
    %v293 = vunpack.c.l.b16 %v261
    %v294 = vunpack.c.l.b16 %v262
    %v295 = vunpack.c.l.b16 %v263
    %v296 = vunpack.c.l.b16 %v264
    %v297 = vunpack.c.l.b16 %v265
    %v298 = vunpack.c.l.b16 %v266
    %v299 = vpack.c.b16 %v284, %v283
    %v300 = vpack.c.b16 %v286, %v285
    %v301 = vpack.c.b16 %v288, %v287
    %v302 = vpack.c.b16 %v290, %v289
    %v303 = vpack.c.b16 %v292, %v291
    %v304 = vpack.c.b16 %v294, %v293
    %v305 = vpack.c.b16 %v296, %v295
    %v306 = vpack.c.b16 %v298, %v297
    %315 = vmatprep.subr.bf16.mxu0 0
    %316 = vmatpush1.bf16.msra.mxu0 %v306
    %317 = vmatprep.subr.bf16.mxu0 0
    %318 = vmatpush1.bf16.msra.mxu0 %v305
    %319 = vmatprep.subr.bf16.mxu0 0
    %320 = vmatpush1.bf16.msra.mxu0 %v304
    %321 = vmatprep.subr.bf16.mxu0 0
    %322 = vmatpush1.bf16.msra.mxu0 %v303
    %323 = vmatprep.subr.bf16.mxu0 0
    %324 = vmatpush1.bf16.msra.mxu0 %v302
    %325 = vmatprep.subr.bf16.mxu0 0
    %326 = vmatpush1.bf16.msra.mxu0 %v301
    %327 = vmatprep.subr.bf16.mxu0 0
    %328 = vmatpush1.bf16.msra.mxu0 %v300
    %329 = vmatprep.subr.bf16.mxu0 0
    %330 = vmatpush1.bf16.msra.mxu0 %v299
    %331 = vmatprep.subr.bf16.mxu0 0
    %332 = vmatpush2.bf16.msra.mxu0 0
    %333 = vmatprep.subr.bf16.mxu0 0
    %334 = vmatpush2.bf16.msra.mxu0 0
    %335 = vmatprep.subr.bf16.mxu0 0
    %336 = vmatpush2.bf16.msra.mxu0 0
    %337 = vmatprep.subr.bf16.mxu0 0
    %338 = vmatpush2.bf16.msra.mxu0 0
    %339 = vmatprep.subr.bf16.mxu0 0
    %340 = vmatpush2.bf16.msra.mxu0 0
    %341 = vmatprep.subr.bf16.mxu0 0
    %342 = vmatpush2.bf16.msra.mxu0 0
    %343 = vmatprep.subr.bf16.mxu0 0
    %344 = vmatpush2.bf16.msra.mxu0 0
    %345 = vmatprep.subr.bf16.mxu0 0
    %346 = vmatpush2.bf16.msra.mxu0 0
    %347 = vmatprep.mubr.bf16.mxu0 0
    %348 = vmatmul.mubr.bf16.gmra.mxu0 %v250
    %v349 = vpop.f32.mrf.mxu0
    %v350 = vadd.f32 0.0, %v349
    %v351 = vpop.f32.mrf.mxu0
    %v352 = vpop.f32.mrf.mxu0
    %v353 = vadd.f32 0.0, %v352
    %v354 = vpop.f32.mrf.mxu0
    %355 = vdwg.mxu0
    %v356 = vadd.f32 %v248, %v350
    %v357 = vadd.f32 %v249, %v353
    %358 = vst [vmem:[#allocation2] sm:$0xff] %v356
    %359 = vst [vmem:[#allocation2 + $0x8] sm:$0xff] %v357
    // Predicated region
    $region38: #{tpu_custom_call.1} parent=1 // pred_check
      %p360 = pneg %p63
    $region39: #{tpu_custom_call.1} parent=1 // pred_check_branch
      %362 = sbr.rel (%p360) target = $region41
    $region40: #{tpu_custom_call.1} parent=1 // pred_region
      %v363 = vld [vmem:[#allocation2] sm:$0xff]
      %v364 = vld [vmem:[#allocation2 + $0x8] sm:$0xff]
      %v365 = vld [vmem:[%s4] sm:$0x1]
      %v367 = vlaneseq
      %v368 = vshrl.u32 %v367, 7
      %v369 = vsub.s32 0, %v368
      %v370 = vrot.slane %v365, %v369
      %v372 = vadd.f32 %v363, %v370
      %v373 = vadd.f32 %v364, %v370
      %374 = vst [vmem:[#allocation9] sm:$0xff] %v372
      %375 = vst [vmem:[#allocation9 + $0x8] sm:$0xff] %v373
    $region41: #{tpu_custom_call.1} parent=1 // pred_fallthru
      _
    // Predicated region
    $region42: #{tpu_custom_call.1} parent=1 // pred_check
      _
    $region43: #{tpu_custom_call.1} parent=1 // pred_check_branch
      %377 = sbr.rel (0) target = $region45
    $region44: #{tpu_custom_call.1} parent=1 // pred_region
      %s379 = ssub.s32 256, 256
      %380 = vsyncadd [#allocation5], %s379
      %s381 = sshll.u32 [#allocation9], 4
      %s382 = int_to_ptr.vmem [resolvable:$true] %s381
      %387 = dma.vmem_to_hbm [thread:$0]  %s382, 256, %s5, [#allocation5], 128, 128, 8
    $region45: #{tpu_custom_call.1} parent=1 // pred_fallthru
      _
    // Predicated region
    $region46: #{tpu_custom_call.1} parent=1 // pred_check
      _
    $region47: #{tpu_custom_call.1} parent=1 // pred_check_branch
      %389 = sbr.rel (0) target = $region49
    $region48: #{tpu_custom_call.1} parent=1 // pred_region
      %390 = dma.done [#allocation5], 256
    $region49: #{tpu_custom_call.1} parent=1 // pred_fallthru
      _
    %391 = vsyncpa [#allocation4], 1
    %392 = vsyncpa [#allocation7], 1
    %393 = vsyncpa [#allocation5], 1

</llo_original>
